<compile_context>
chip_gen: v7x
topology: tpu7x:2x2x1
jax: 0.10.0
libtpu: 0.0.40
codegen_flags: <defaults>
</compile_context>

<pallas_src>
import functools
import math

import jax
import jax.numpy as jnp
from jax import lax
from jax.experimental import pallas as pl
from jax.experimental.pallas import tpu as pltpu

EPS = 1e-6    # used only by EMALoss.backward in the original module (not needed forward)
ALPHA = 0.01


def _round_up(x, m):
    return ((x + m - 1) // m) * m


def _mine_kernel(x_ref, z_ref, zm_ref,
                 w1x_ref, w1z_ref, b1_ref,
                 w2_ref, b2_ref,
                 w3_ref, b3_ref,
                 out_ref,
                 acc_sc, m_sc, l_sc,
                 *, n_total, steps_per_core):
    c = pl.program_id(0)          # core / outer 'parallel' axis
    j = pl.program_id(1)          # batch-tile / inner 'arbitrary' axis
    last = pl.num_programs(1) - 1

    @pl.when(j == 0)
    def _init():
        acc_sc[...] = jnp.zeros(acc_sc.shape, jnp.float32)
        m_sc[...] = jnp.full(m_sc.shape, -jnp.inf, jnp.float32)
        l_sc[...] = jnp.zeros(l_sc.shape, jnp.float32)

    tn = x_ref.shape[0]
    # Validity mask for padded tail rows.
    row0 = (c * steps_per_core + j) * tn
    rows = row0 + lax.broadcasted_iota(jnp.int32, (tn, 1), 0)
    mask = rows < n_total
    maskf = mask.astype(jnp.float32)

    # ---- statistics network ----
    # Layer 1, x-side: computed ONCE (bf16 inputs already in HBM), reused for both passes.
    xw1 = jnp.dot(x_ref[...], w1x_ref[...], preferred_element_type=jnp.float32)   # (tn, H)

    def trunk(z_tile):
        zw1 = jnp.dot(z_tile, w1z_ref[...], preferred_element_type=jnp.float32)   # (tn, H)
        h1 = jnp.maximum(xw1 + zw1 + b1_ref[...], 0.0)
        h2 = jnp.maximum(
            jnp.dot(h1.astype(jnp.bfloat16), w2_ref[...],
                    preferred_element_type=jnp.float32) + b2_ref[...], 0.0)        # (tn, H)
        return h2

    h2_joint = trunk(z_ref[...])       # T hidden for (x, z)
    h2_marg = trunk(zm_ref[...])       # T hidden for (x, z_marg)

    w3 = w3_ref[...]                   # (1, H) output row, f32
    b3 = b3_ref[0, 0]

    # Joint running sum without per-row scores: sum_rows(h2 . w3 + b3), padding masked.
    count = jnp.sum(maskf)
    acc_sc[...] += (jnp.sum(h2_joint * w3 * maskf) + count * b3).reshape(1, 1)

    # Marginal per-row scores -> online logsumexp (running max + rescaled sum-exp).
    s_marg = jnp.sum(h2_marg * w3, axis=-1, keepdims=True) + b3                    # (tn, 1)
    s_marg = jnp.where(mask, s_marg, -jnp.inf)
    m_new = jnp.maximum(m_sc[...], jnp.max(s_marg).reshape(1, 1))
    l_sc[...] = (l_sc[...] * jnp.exp(m_sc[...] - m_new)
                 + jnp.sum(jnp.exp(s_marg - m_new)).reshape(1, 1))
    m_sc[...] = m_new

    @pl.when(j == last)
    def _finalize():
        # Pack the per-core partials [sum_joint, max_marg, sumexp_marg] lane-dense.
        lane = lax.broadcasted_iota(jnp.int32, out_ref.shape, 2)
        out_ref[...] = jnp.where(lane == 0, acc_sc[0, 0],
                         jnp.where(lane == 1, m_sc[0, 0],
                           jnp.where(lane == 2, l_sc[0, 0], 0.0)))


def init_params(key, dim_x, dim_z, hidden):
    """Deterministic init of the T statistics-network parameters (f32)."""
    k1, k2, k3 = jax.random.split(key, 3)
    d_in = dim_x + dim_z
    w1 = jax.random.normal(k1, (d_in, hidden), jnp.float32) * (1.0 / math.sqrt(d_in))
    b1 = jnp.zeros((1, hidden), jnp.float32)
    w2 = jax.random.normal(k2, (hidden, hidden), jnp.float32) * (1.0 / math.sqrt(hidden))
    b2 = jnp.zeros((1, hidden), jnp.float32)
    w3 = jax.random.normal(k3, (hidden, 1), jnp.float32) * (1.0 / math.sqrt(hidden))
    b3 = jnp.zeros((1, 1), jnp.float32)
    return dict(w1x=w1[:dim_x], w1z=w1[dim_x:], b1=b1, w2=w2, b2=b2, w3=w3, b3=b3)


def mine_forward(params, x, z, running_mean, perm_key, *, max_tile=2048, split_cores=True):
    """Mine.forward(x, z) with loss='mine': returns (t, second_term, new_running_mean)."""
    n, dx = x.shape
    dz = z.shape[1]
    h = params["w2"].shape[0]

    # bf16 batch tensors in HBM; z[perm] gather (host-side torch.randperm reproduced
    # with jax.random.permutation) done on the bf16 copy.
    x_bf = x.astype(jnp.bfloat16)
    z_bf = z.astype(jnp.bfloat16)
    perm = jax.random.permutation(perm_key, n)
    z_marg = z_bf[perm]

    # Tile selection: pad N up to a tile multiple (masked inside the kernel).
    if n > max_tile:
        tile_n = max_tile
    else:
        tile_n = max(16, _round_up(n, 16))
    total_steps = -(-n // tile_n)
    ncores = 2 if (split_cores and total_steps >= 2) else 1
    steps_per_core = -(-total_steps // ncores)
    n_pad = ncores * steps_per_core * tile_n

    def pad_rows(a):
        if a.shape[0] == n_pad:
            return a
        pad = jnp.zeros((n_pad - a.shape[0],) + a.shape[1:], a.dtype)
        return jnp.concatenate([a, pad], axis=0)

    x_bf, z_bf, z_marg = pad_rows(x_bf), pad_rows(z_bf), pad_rows(z_marg)

    # MXU weight operands in bf16; biases / output row stay f32.
    w1x = params["w1x"].astype(jnp.bfloat16)
    w1z = params["w1z"].astype(jnp.bfloat16)
    w2 = params["w2"].astype(jnp.bfloat16)
    b1 = params["b1"].astype(jnp.float32)
    b2 = params["b2"].astype(jnp.float32)
    w3row = params["w3"].reshape(1, h).astype(jnp.float32)
    b3 = params["b3"].reshape(1, 1).astype(jnp.float32)

    const = lambda c, j: (0, 0)
    batch_map = lambda c, j: (c * steps_per_core + j, 0)

    grid_spec = pltpu.PrefetchScalarGridSpec(
        num_scalar_prefetch=0,
        grid=(ncores, steps_per_core),
        in_specs=[
            pl.BlockSpec((tile_n, dx), batch_map),   # x       (bf16)
            pl.BlockSpec((tile_n, dz), batch_map),   # z       (bf16)
            pl.BlockSpec((tile_n, dz), batch_map),   # z_marg  (bf16)
            pl.BlockSpec((dx, h), const),            # w1x (VMEM-resident)
            pl.BlockSpec((dz, h), const),            # w1z
            pl.BlockSpec((1, h), const),             # b1
            pl.BlockSpec((h, h), const),             # w2
            pl.BlockSpec((1, h), const),             # b2
            pl.BlockSpec((1, h), const),             # w3 (as a lane row)
            pl.BlockSpec((1, 1), const),             # b3
        ],
        out_specs=pl.BlockSpec((1, 8, 128), lambda c, j: (c, 0, 0)),
        scratch_shapes=[pltpu.VMEM((1, 1), jnp.float32),    # per-core joint-score sum
                        pltpu.VMEM((1, 1), jnp.float32),    # per-core online max
                        pltpu.VMEM((1, 1), jnp.float32)],   # per-core online sum-exp
    )

    flops = 2 * n * h * (dx + 2 * dz + 2 * h + 2)
    bytes_accessed = (2 * n * (dx + 2 * dz)            # x, z, z_marg (bf16 in HBM)
                      + 2 * (dx * h + dz * h + h * h)  # bf16 weights
                      + 4 * (3 * h + 2)                # biases, w3 row
                      + 4 * ncores * 8 * 128)          # packed partial output
    cost = pl.CostEstimate(flops=flops, transcendentals=n + 8,
                           bytes_accessed=bytes_accessed)

    out = pl.pallas_call(
        functools.partial(_mine_kernel, n_total=n, steps_per_core=steps_per_core),
        out_shape=jax.ShapeDtypeStruct((ncores, 8, 128), jnp.float32),
        grid_spec=grid_spec,
        compiler_params=pltpu.CompilerParams(
            dimension_semantics=("parallel", "arbitrary"),
            vmem_limit_bytes=32 * 1024 * 1024,
        ),
        cost_estimate=cost,
    )(x_bf, z_bf, z_marg, w1x, w1z, b1, w2, b2, w3row, b3)

    # Tiny scalar epilogue: combine per-core partials and apply the EMA update.
    sums = out[:, 0, 0]
    ms = out[:, 0, 1]
    ls = out[:, 0, 2]
    t = jnp.sum(sums) / jnp.float32(n)
    m_tot = jnp.max(ms)
    l_tot = jnp.sum(ls * jnp.exp(ms - m_tot))
    t_log = m_tot + jnp.log(l_tot) - jnp.float32(math.log(n))   # second_term
    t_exp = jnp.exp(t_log)                                      # detached EMA target
    rm = jnp.asarray(running_mean, jnp.float32)
    rm_new = jnp.where(rm == 0.0, t_exp, ALPHA * t_exp + (1.0 - ALPHA) * rm)
    return t, t_log, rm_new


def mine_forward_ref(params, x, z, running_mean, perm_key, *, emulate_bf16=True):
    """Pure-JAX reference (optionally emulating the kernel's bf16 MXU inputs)."""
    n = x.shape[0]
    perm = jax.random.permutation(perm_key, n)
    z_marg = z[perm]

    def cast(a):
        return a.astype(jnp.bfloat16) if emulate_bf16 else a

    w1x, w1z = params["w1x"], params["w1z"]
    w2, w3 = params["w2"], params["w3"]
    b1, b2, b3 = params["b1"], params["b2"], params["b3"]
    w3row = w3.reshape(1, -1)

    def T(a, b):
        h1 = (jnp.dot(cast(a), cast(w1x), preferred_element_type=jnp.float32)
              + jnp.dot(cast(b), cast(w1z), preferred_element_type=jnp.float32) + b1)
        h1 = jnp.maximum(h1, 0.0)
        h2 = jnp.maximum(
            jnp.dot(cast(h1), cast(w2), preferred_element_type=jnp.float32) + b2, 0.0)
        return jnp.sum(h2 * w3row, axis=-1, keepdims=True) + b3

    t = jnp.mean(T(x, z))
    t_marg = T(x, z_marg)
    t_log = jax.scipy.special.logsumexp(t_marg) - jnp.log(jnp.float32(n))
    t_exp = jnp.exp(t_log)
    rm = jnp.float32(running_mean)
    rm_new = jnp.where(rm == 0.0, t_exp, ALPHA * t_exp + (1.0 - ALPHA) * rm)
    return t, t_log, rm_new


if __name__ == "__main__":
    key = jax.random.PRNGKey(0)
    running_mean = 0.0   # self.running_mean = 0 in __init__

    # ---- test 1: small shapes (batch=8, dim_x=16, dim_z=16, hidden=64), single tile ----
    N, DX, DZ, H = 8, 16, 16, 64
    kx, kz, kp, kperm = jax.random.split(key, 4)
    x = jax.random.normal(kx, (N, DX), jnp.float32)
    z = jax.random.normal(kz, (N, DZ), jnp.float32)
    params = init_params(kp, DX, DZ, H)

    t, second_term, rm_new = mine_forward(params, x, z, running_mean, kperm)
    jax.block_until_ready((t, second_term, rm_new))

    t_r, sec_r, rm_r = mine_forward_ref(params, x, z, running_mean, kperm, emulate_bf16=True)
    assert jnp.allclose(t, t_r, atol=2e-3, rtol=2e-3), (t, t_r)
    assert jnp.allclose(second_term, sec_r, atol=2e-3, rtol=2e-3), (second_term, sec_r)
    assert jnp.allclose(rm_new, rm_r, atol=2e-3, rtol=2e-3), (rm_new, rm_r)

    t_f, sec_f, rm_f = mine_forward_ref(params, x, z, running_mean, kperm, emulate_bf16=False)
    assert jnp.allclose(t, t_f, atol=5e-2, rtol=5e-2), (t, t_f)
    assert jnp.allclose(second_term, sec_f, atol=5e-2, rtol=5e-2), (second_term, sec_f)
    assert jnp.allclose(rm_new, rm_f, atol=5e-2, rtol=5e-2), (rm_new, rm_f)

    # ---- test 2: non-divisible batch, multi-tile grid, 2-way core split, masked padding ----
    N2 = 300
    kx2, kz2, kperm2 = jax.random.split(jax.random.PRNGKey(1), 3)
    x2 = jax.random.normal(kx2, (N2, DX), jnp.float32)
    z2 = jax.random.normal(kz2, (N2, DZ), jnp.float32)
    rm_prev = 0.7   # exercise the non-zero running-mean EMA branch

    t2, sec2, rm2 = mine_forward(params, x2, z2, rm_prev, kperm2, max_tile=64, split_cores=True)
    jax.block_until_ready((t2, sec2, rm2))
    t2r, sec2r, rm2r = mine_forward_ref(params, x2, z2, rm_prev, kperm2, emulate_bf16=True)
    assert jnp.allclose(t2, t2r, atol=3e-3, rtol=3e-3), (t2, t2r)
    assert jnp.allclose(sec2, sec2r, atol=3e-3, rtol=3e-3), (sec2, sec2r)
    assert jnp.allclose(rm2, rm2r, atol=3e-3, rtol=3e-3), (rm2, rm2r)

    print("KERNEL_OK")
</pallas_src>

<mosaic_0001>
module attributes {stable_mosaic.version = 11 : i64} {
  func.func @_mine_kernel(%arg0: i32, %arg1: i32, %arg2: memref<16x16xbf16, #tpu.memory_space<vmem>>, %arg3: memref<16x16xbf16, #tpu.memory_space<vmem>>, %arg4: memref<16x16xbf16, #tpu.memory_space<vmem>>, %arg5: memref<16x64xbf16, #tpu.memory_space<vmem>>, %arg6: memref<16x64xbf16, #tpu.memory_space<vmem>>, %arg7: memref<1x64xf32, #tpu.memory_space<vmem>>, %arg8: memref<64x64xbf16, #tpu.memory_space<vmem>>, %arg9: memref<1x64xf32, #tpu.memory_space<vmem>>, %arg10: memref<1x64xf32, #tpu.memory_space<vmem>>, %arg11: memref<1x1xf32, #tpu.memory_space<vmem>>, %arg12: memref<1x8x128xf32, #tpu.memory_space<vmem>>, %arg13: memref<1x1xf32, #tpu.memory_space<vmem>>, %arg14: memref<1x1xf32, #tpu.memory_space<vmem>>, %arg15: memref<1x1xf32, #tpu.memory_space<vmem>>) attributes {dimension_semantics = [#tpu.dimension_semantics<parallel>, #tpu.dimension_semantics<arbitrary>], iteration_bounds = array<i64: 1, 1>, scalar_prefetch = 0 : i64, scratch_operands = 3 : i64, tpu.core_type = #tpu.core_type<tc>, window_params = [{transform_indices = @transform_0, window_bounds = array<i64: 16, 16>}, {transform_indices = @transform_1, window_bounds = array<i64: 16, 16>}, {transform_indices = @transform_2, window_bounds = array<i64: 16, 16>}, {pipeline_mode = #tpu.pipeline_mode<synchronous>, transform_indices = @transform_3, window_bounds = array<i64: 16, 64>}, {pipeline_mode = #tpu.pipeline_mode<synchronous>, transform_indices = @transform_4, window_bounds = array<i64: 16, 64>}, {pipeline_mode = #tpu.pipeline_mode<synchronous>, transform_indices = @transform_5, window_bounds = array<i64: 1, 64>}, {pipeline_mode = #tpu.pipeline_mode<synchronous>, transform_indices = @transform_6, window_bounds = array<i64: 64, 64>}, {pipeline_mode = #tpu.pipeline_mode<synchronous>, transform_indices = @transform_7, window_bounds = array<i64: 1, 64>}, {pipeline_mode = #tpu.pipeline_mode<synchronous>, transform_indices = @transform_8, window_bounds = array<i64: 1, 64>}, {pipeline_mode = #tpu.pipeline_mode<synchronous>, transform_indices = @transform_9, window_bounds = array<i64: 1, 1>}, {transform_indices = @transform_10, window_bounds = array<i64: 1, 8, 128>}]} {
    %c0_i32 = arith.constant 0 : i32
    %0 = arith.cmpi eq, %arg1, %c0_i32 : i32
    %1 = arith.extui %0 : i1 to i32
    %c0_i32_0 = arith.constant 0 : i32
    %2 = arith.cmpi ne, %1, %c0_i32_0 : i32
    scf.if %2 {
      %cst_58 = arith.constant 0.000000e+00 : f32
      %105 = vector.broadcast %cst_58 : f32 to vector<1x1xf32>
      %c0_59 = arith.constant 0 : index
      %c0_60 = arith.constant 0 : index
      %106 = vector.load %arg13[%c0_59, %c0_60] : memref<1x1xf32, #tpu.memory_space<vmem>>, vector<1x1xf32>
      tpu.vector_store %arg13[%c0_59, %c0_60], %105 {strides = array<i32>} : memref<1x1xf32, #tpu.memory_space<vmem>>, vector<1x1xf32>,
      %cst_61 = arith.constant 0xFF800000 : f32
      %107 = vector.broadcast %cst_61 : f32 to vector<1x1xf32>
      %c0_62 = arith.constant 0 : index
      %c0_63 = arith.constant 0 : index
      %108 = vector.load %arg14[%c0_62, %c0_63] : memref<1x1xf32, #tpu.memory_space<vmem>>, vector<1x1xf32>
      tpu.vector_store %arg14[%c0_62, %c0_63], %107 {strides = array<i32>} : memref<1x1xf32, #tpu.memory_space<vmem>>, vector<1x1xf32>,
      %cst_64 = arith.constant 0.000000e+00 : f32
      %109 = vector.broadcast %cst_64 : f32 to vector<1x1xf32>
      %c0_65 = arith.constant 0 : index
      %c0_66 = arith.constant 0 : index
      %110 = vector.load %arg15[%c0_65, %c0_66] : memref<1x1xf32, #tpu.memory_space<vmem>>, vector<1x1xf32>
      tpu.vector_store %arg15[%c0_65, %c0_66], %109 {strides = array<i32>} : memref<1x1xf32, #tpu.memory_space<vmem>>, vector<1x1xf32>,
    } else {
    }
    %c1_i32 = arith.constant 1 : i32
    %3 = arith.muli %arg0, %c1_i32 : i32
    %4 = arith.addi %3, %arg1 : i32
    %c16_i32 = arith.constant 16 : i32
    %5 = arith.muli %4, %c16_i32 : i32
    %6 = tpu.iota {dimensions = array<i32: 0>} : vector<16x1xi32>
    %7 = vector.broadcast %5 : i32 to vector<16x1xi32>
    %8 = arith.addi %7, %6 : vector<16x1xi32>
    %c8_i32 = arith.constant 8 : i32
    %9 = vector.broadcast %c8_i32 : i32 to vector<16x1xi32>
    %10 = arith.cmpi slt, %8, %9 : vector<16x1xi32>
    %11 = arith.extui %10 : vector<16x1xi1> to vector<16x1xi32>
    %12 = arith.sitofp %11 : vector<16x1xi32> to vector<16x1xf32>
    %c0 = arith.constant 0 : index
    %c0_1 = arith.constant 0 : index
    %13 = vector.load %arg2[%c0, %c0_1] : memref<16x16xbf16, #tpu.memory_space<vmem>>, vector<16x16xbf16>
    %c0_2 = arith.constant 0 : index
    %c0_3 = arith.constant 0 : index
    %14 = vector.load %arg5[%c0_2, %c0_3] : memref<16x64xbf16, #tpu.memory_space<vmem>>, vector<16x64xbf16>
    %cst = arith.constant dense<0.000000e+00> : vector<16x64xf32>
    %15 = tpu.matmul %13, %14, %cst {dimension_numbers = #tpu.dot_dimension_numbers<[1], [0], [0], [1], [0, 0, 1, 1], [], []>} : vector<16x16xbf16>, vector<16x64xbf16>, vector<16x64xf32> -> vector<16x64xf32>
    %c0_4 = arith.constant 0 : index
    %c0_5 = arith.constant 0 : index
    %16 = vector.load %arg3[%c0_4, %c0_5] : memref<16x16xbf16, #tpu.memory_space<vmem>>, vector<16x16xbf16>
    %c0_6 = arith.constant 0 : index
    %c0_7 = arith.constant 0 : index
    %17 = vector.load %arg6[%c0_6, %c0_7] : memref<16x64xbf16, #tpu.memory_space<vmem>>, vector<16x64xbf16>
    %cst_8 = arith.constant dense<0.000000e+00> : vector<16x64xf32>
    %18 = tpu.matmul %16, %17, %cst_8 {dimension_numbers = #tpu.dot_dimension_numbers<[1], [0], [0], [1], [0, 0, 1, 1], [], []>} : vector<16x16xbf16>, vector<16x64xbf16>, vector<16x64xf32> -> vector<16x64xf32>
    %19 = arith.addf %15, %18 : vector<16x64xf32>
    %c0_9 = arith.constant 0 : index
    %c0_10 = arith.constant 0 : index
    %20 = vector.load %arg7[%c0_9, %c0_10] : memref<1x64xf32, #tpu.memory_space<vmem>>, vector<1x64xf32>
    %21 = vector.broadcast %20 : vector<1x64xf32> to vector<16x64xf32>
    %22 = arith.addf %19, %21 : vector<16x64xf32>
    %cst_11 = arith.constant 0.000000e+00 : f32
    %23 = vector.broadcast %cst_11 : f32 to vector<16x64xf32>
    %24 = arith.maximumf %22, %23 : vector<16x64xf32>
    %25 = arith.truncf %24 : vector<16x64xf32> to vector<16x64xbf16>
    %c0_12 = arith.constant 0 : index
    %c0_13 = arith.constant 0 : index
    %26 = vector.load %arg8[%c0_12, %c0_13] : memref<64x64xbf16, #tpu.memory_space<vmem>>, vector<64x64xbf16>
    %cst_14 = arith.constant dense<0.000000e+00> : vector<16x64xf32>
    %27 = tpu.matmul %25, %26, %cst_14 {dimension_numbers = #tpu.dot_dimension_numbers<[1], [0], [0], [1], [0, 0, 1, 1], [], []>} : vector<16x64xbf16>, vector<64x64xbf16>, vector<16x64xf32> -> vector<16x64xf32>
    %c0_15 = arith.constant 0 : index
    %c0_16 = arith.constant 0 : index
    %28 = vector.load %arg9[%c0_15, %c0_16] : memref<1x64xf32, #tpu.memory_space<vmem>>, vector<1x64xf32>
    %29 = vector.broadcast %28 : vector<1x64xf32> to vector<16x64xf32>
    %30 = arith.addf %27, %29 : vector<16x64xf32>
    %cst_17 = arith.constant 0.000000e+00 : f32
    %31 = vector.broadcast %cst_17 : f32 to vector<16x64xf32>
    %32 = arith.maximumf %30, %31 : vector<16x64xf32>
    %c0_18 = arith.constant 0 : index
    %c0_19 = arith.constant 0 : index
    %33 = vector.load %arg4[%c0_18, %c0_19] : memref<16x16xbf16, #tpu.memory_space<vmem>>, vector<16x16xbf16>
    %c0_20 = arith.constant 0 : index
    %c0_21 = arith.constant 0 : index
    %34 = vector.load %arg6[%c0_20, %c0_21] : memref<16x64xbf16, #tpu.memory_space<vmem>>, vector<16x64xbf16>
    %cst_22 = arith.constant dense<0.000000e+00> : vector<16x64xf32>
    %35 = tpu.matmul %33, %34, %cst_22 {dimension_numbers = #tpu.dot_dimension_numbers<[1], [0], [0], [1], [0, 0, 1, 1], [], []>} : vector<16x16xbf16>, vector<16x64xbf16>, vector<16x64xf32> -> vector<16x64xf32>
    %36 = arith.addf %15, %35 : vector<16x64xf32>
    %c0_23 = arith.constant 0 : index
    %c0_24 = arith.constant 0 : index
    %37 = vector.load %arg7[%c0_23, %c0_24] : memref<1x64xf32, #tpu.memory_space<vmem>>, vector<1x64xf32>
    %38 = vector.broadcast %37 : vector<1x64xf32> to vector<16x64xf32>
    %39 = arith.addf %36, %38 : vector<16x64xf32>
    %cst_25 = arith.constant 0.000000e+00 : f32
    %40 = vector.broadcast %cst_25 : f32 to vector<16x64xf32>
    %41 = arith.maximumf %39, %40 : vector<16x64xf32>
    %42 = arith.truncf %41 : vector<16x64xf32> to vector<16x64xbf16>
    %c0_26 = arith.constant 0 : index
    %c0_27 = arith.constant 0 : index
    %43 = vector.load %arg8[%c0_26, %c0_27] : memref<64x64xbf16, #tpu.memory_space<vmem>>, vector<64x64xbf16>
    %cst_28 = arith.constant dense<0.000000e+00> : vector<16x64xf32>
    %44 = tpu.matmul %42, %43, %cst_28 {dimension_numbers = #tpu.dot_dimension_numbers<[1], [0], [0], [1], [0, 0, 1, 1], [], []>} : vector<16x64xbf16>, vector<64x64xbf16>, vector<16x64xf32> -> vector<16x64xf32>
    %c0_29 = arith.constant 0 : index
    %c0_30 = arith.constant 0 : index
    %45 = vector.load %arg9[%c0_29, %c0_30] : memref<1x64xf32, #tpu.memory_space<vmem>>, vector<1x64xf32>
    %46 = vector.broadcast %45 : vector<1x64xf32> to vector<16x64xf32>
    %47 = arith.addf %44, %46 : vector<16x64xf32>
    %cst_31 = arith.constant 0.000000e+00 : f32
    %48 = vector.broadcast %cst_31 : f32 to vector<16x64xf32>
    %49 = arith.maximumf %47, %48 : vector<16x64xf32>
    %c0_32 = arith.constant 0 : index
    %c0_33 = arith.constant 0 : index
    %50 = vector.load %arg10[%c0_32, %c0_33] : memref<1x64xf32, #tpu.memory_space<vmem>>, vector<1x64xf32>
    %c0_34 = arith.constant 0 : index
    %c0_35 = arith.constant 0 : index
    %51 = vector.load %arg11[%c0_34, %c0_35] : memref<1x1xf32, #tpu.memory_space<vmem>>, vector<1x1xf32>
    %52 = vector.extract %51[0, 0] : f32 from vector<1x1xf32>
    %53 = vector.shape_cast %12 : vector<16x1xf32> to vector<1x16x1xf32>
    %cst_36 = arith.constant dense<0.000000e+00> : vector<1xf32>
    %54 = vector.multi_reduction <add>, %53, %cst_36 [1, 2] : vector<1x16x1xf32> to vector<1xf32>
    %55 = vector.shape_cast %54 : vector<1xf32> to vector<1x1x1xf32>
    %56 = vector.extract %55[0, 0, 0] : f32 from vector<1x1x1xf32>
    %c0_37 = arith.constant 0 : index
    %c0_38 = arith.constant 0 : index
    %57 = vector.load %arg13[%c0_37, %c0_38] : memref<1x1xf32, #tpu.memory_space<vmem>>, vector<1x1xf32>
    %58 = vector.broadcast %50 : vector<1x64xf32> to vector<16x64xf32>
    %59 = arith.mulf %32, %58 : vector<16x64xf32>
    %60 = vector.broadcast %12 : vector<16x1xf32> to vector<16x64xf32>
    %61 = arith.mulf %59, %60 : vector<16x64xf32>
    %62 = vector.shape_cast %61 : vector<16x64xf32> to vector<1x16x64xf32>
    %cst_39 = arith.constant dense<0.000000e+00> : vector<1xf32>
    %63 = vector.multi_reduction <add>, %62, %cst_39 [1, 2] : vector<1x16x64xf32> to vector<1xf32>
    %64 = vector.shape_cast %63 : vector<1xf32> to vector<1x1x1xf32>
    %65 = vector.extract %64[0, 0, 0] : f32 from vector<1x1x1xf32>
    %66 = arith.mulf %56, %52 : f32
    %67 = arith.addf %65, %66 : f32
    %68 = vector.broadcast %67 : f32 to vector<1x1xf32>
    %69 = arith.addf %57, %68 : vector<1x1xf32>
    %c0_40 = arith.constant 0 : index
    %c0_41 = arith.constant 0 : index
    %70 = vector.load %arg13[%c0_40, %c0_41] : memref<1x1xf32, #tpu.memory_space<vmem>>, vector<1x1xf32>
    tpu.vector_store %arg13[%c0_40, %c0_41], %69 {strides = array<i32>} : memref<1x1xf32, #tpu.memory_space<vmem>>, vector<1x1xf32>,
    %71 = vector.broadcast %50 : vector<1x64xf32> to vector<16x64xf32>
    %72 = arith.mulf %49, %71 : vector<16x64xf32>
    %cst_42 = arith.constant dense<0.000000e+00> : vector<16xf32>
    %73 = vector.multi_reduction <add>, %72, %cst_42 [1] : vector<16x64xf32> to vector<16xf32>
    %74 = vector.shape_cast %73 : vector<16xf32> to vector<16x1xf32>
    %75 = vector.broadcast %52 : f32 to vector<16x1xf32>
    %76 = arith.addf %74, %75 : vector<16x1xf32>
    %cst_43 = arith.constant 0xFF800000 : f32
    %77 = vector.broadcast %cst_43 : f32 to vector<16x1xf32>
    %78 = arith.select %10, %76, %77 : vector<16x1xi1>, vector<16x1xf32>
    %c0_44 = arith.constant 0 : index
    %c0_45 = arith.constant 0 : index
    %79 = vector.load %arg14[%c0_44, %c0_45] : memref<1x1xf32, #tpu.memory_space<vmem>>, vector<1x1xf32>
    %80 = vector.shape_cast %78 : vector<16x1xf32> to vector<1x16x1xf32>
    %cst_46 = arith.constant dense<0xFF800000> : vector<1xf32>
    %81 = vector.multi_reduction <maximumf>, %80, %cst_46 [1, 2] : vector<1x16x1xf32> to vector<1xf32>
    %82 = vector.shape_cast %81 : vector<1xf32> to vector<1x1x1xf32>
    %83 = vector.extract %82[0, 0, 0] : f32 from vector<1x1x1xf32>
    %84 = vector.broadcast %83 : f32 to vector<1x1xf32>
    %85 = arith.maximumf %79, %84 : vector<1x1xf32>
    %c0_47 = arith.constant 0 : index
    %c0_48 = arith.constant 0 : index
    %86 = vector.load %arg15[%c0_47, %c0_48] : memref<1x1xf32, #tpu.memory_space<vmem>>, vector<1x1xf32>
    %c0_49 = arith.constant 0 : index
    %c0_50 = arith.constant 0 : index
    %87 = vector.load %arg14[%c0_49, %c0_50] : memref<1x1xf32, #tpu.memory_space<vmem>>, vector<1x1xf32>
    %88 = arith.subf %87, %85 : vector<1x1xf32>
    %89 = math.exp %88 : vector<1x1xf32>
    %90 = arith.mulf %86, %89 : vector<1x1xf32>
    %91 = vector.broadcast %85 : vector<1x1xf32> to vector<16x1xf32>
    %92 = arith.subf %78, %91 : vector<16x1xf32>
    %93 = math.exp %92 : vector<16x1xf32>
    %94 = vector.shape_cast %93 : vector<16x1xf32> to vector<1x16x1xf32>
    %cst_51 = arith.constant dense<0.000000e+00> : vector<1xf32>
    %95 = vector.multi_reduction <add>, %94, %cst_51 [1, 2] : vector<1x16x1xf32> to vector<1xf32>
    %96 = vector.shape_cast %95 : vector<1xf32> to vector<1x1x1xf32>
    %97 = vector.extract %96[0, 0, 0] : f32 from vector<1x1x1xf32>
    %98 = vector.broadcast %97 : f32 to vector<1x1xf32>
    %99 = arith.addf %90, %98 : vector<1x1xf32>
    %c0_52 = arith.constant 0 : index
    %c0_53 = arith.constant 0 : index
    %100 = vector.load %arg15[%c0_52, %c0_53] : memref<1x1xf32, #tpu.memory_space<vmem>>, vector<1x1xf32>
    tpu.vector_store %arg15[%c0_52, %c0_53], %99 {strides = array<i32>} : memref<1x1xf32, #tpu.memory_space<vmem>>, vector<1x1xf32>,
    %c0_54 = arith.constant 0 : index
    %c0_55 = arith.constant 0 : index
    %101 = vector.load %arg14[%c0_54, %c0_55] : memref<1x1xf32, #tpu.memory_space<vmem>>, vector<1x1xf32>
    tpu.vector_store %arg14[%c0_54, %c0_55], %85 {strides = array<i32>} : memref<1x1xf32, #tpu.memory_space<vmem>>, vector<1x1xf32>,
    %c0_i32_56 = arith.constant 0 : i32
    %102 = arith.cmpi eq, %arg1, %c0_i32_56 : i32
    %103 = arith.extui %102 : i1 to i32
    %c0_i32_57 = arith.constant 0 : i32
    %104 = arith.cmpi ne, %103, %c0_i32_57 : i32
    scf.if %104 {
      %105 = tpu.iota {dimensions = array<i32: 2>} : vector<1x8x128xi32>
      %c0_i32_58 = arith.constant 0 : i32
      %106 = vector.broadcast %c0_i32_58 : i32 to vector<1x8x128xi32>
      %107 = arith.cmpi eq, %105, %106 : vector<1x8x128xi32>
      %c0_59 = arith.constant 0 : index
      %c0_60 = arith.constant 0 : index
      %108 = vector.load %arg13[%c0_59, %c0_60] : memref<1x1xf32, #tpu.memory_space<vmem>>, vector<1x1xf32>
      %109 = vector.extract %108[0, 0] : f32 from vector<1x1xf32>
      %c1_i32_61 = arith.constant 1 : i32
      %110 = vector.broadcast %c1_i32_61 : i32 to vector<1x8x128xi32>
      %111 = arith.cmpi eq, %105, %110 : vector<1x8x128xi32>
      %c0_62 = arith.constant 0 : index
      %c0_63 = arith.constant 0 : index
      %112 = vector.load %arg14[%c0_62, %c0_63] : memref<1x1xf32, #tpu.memory_space<vmem>>, vector<1x1xf32>
      %113 = vector.extract %112[0, 0] : f32 from vector<1x1xf32>
      %c2_i32 = arith.constant 2 : i32
      %114 = vector.broadcast %c2_i32 : i32 to vector<1x8x128xi32>
      %115 = arith.cmpi eq, %105, %114 : vector<1x8x128xi32>
      %c0_64 = arith.constant 0 : index
      %c0_65 = arith.constant 0 : index
      %116 = vector.load %arg15[%c0_64, %c0_65] : memref<1x1xf32, #tpu.memory_space<vmem>>, vector<1x1xf32>
      %117 = vector.extract %116[0, 0] : f32 from vector<1x1xf32>
      %cst_66 = arith.constant 0.000000e+00 : f32
      %118 = vector.broadcast %117 : f32 to vector<1x8x128xf32>
      %119 = vector.broadcast %cst_66 : f32 to vector<1x8x128xf32>
      %120 = arith.select %115, %118, %119 : vector<1x8x128xi1>, vector<1x8x128xf32>
      %121 = vector.broadcast %113 : f32 to vector<1x8x128xf32>
      %122 = arith.select %111, %121, %120 : vector<1x8x128xi1>, vector<1x8x128xf32>
      %123 = vector.broadcast %109 : f32 to vector<1x8x128xf32>
      %124 = arith.select %107, %123, %122 : vector<1x8x128xi1>, vector<1x8x128xf32>
      %c0_67 = arith.constant 0 : index
      %c0_68 = arith.constant 0 : index
      %c0_69 = arith.constant 0 : index
      %125 = vector.load %arg12[%c0_67, %c0_68, %c0_69] : memref<1x8x128xf32, #tpu.memory_space<vmem>>, vector<1x8x128xf32>
      tpu.vector_store %arg12[%c0_67, %c0_68, %c0_69], %124 {strides = array<i32>} : memref<1x8x128xf32, #tpu.memory_space<vmem>>, vector<1x8x128xf32>,
    } else {
    }
    return
  }
  func.func @transform_0(%arg0: i32, %arg1: i32) -> (i32, i32) {
    %c1_i32 = arith.constant 1 : i32
    %0 = arith.muli %arg0, %c1_i32 : i32
    %1 = arith.addi %0, %arg1 : i32
    %c0_i32 = arith.constant 0 : i32
    %c0_i32_0 = arith.constant 0 : i32
    return %1, %c0_i32 : i32, i32
  }
  func.func @transform_1(%arg0: i32, %arg1: i32) -> (i32, i32) {
    %c1_i32 = arith.constant 1 : i32
    %0 = arith.muli %arg0, %c1_i32 : i32
    %1 = arith.addi %0, %arg1 : i32
    %c0_i32 = arith.constant 0 : i32
    %c0_i32_0 = arith.constant 0 : i32
    return %1, %c0_i32 : i32, i32
  }
  func.func @transform_2(%arg0: i32, %arg1: i32) -> (i32, i32) {
    %c1_i32 = arith.constant 1 : i32
    %0 = arith.muli %arg0, %c1_i32 : i32
    %1 = arith.addi %0, %arg1 : i32
    %c0_i32 = arith.constant 0 : i32
    %c0_i32_0 = arith.constant 0 : i32
    return %1, %c0_i32 : i32, i32
  }
  func.func @transform_3(%arg0: i32, %arg1: i32) -> (i32, i32) {
    %c0_i32 = arith.constant 0 : i32
    %c0_i32_0 = arith.constant 0 : i32
    %c0_i32_1 = arith.constant 0 : i32
    return %c0_i32, %c0_i32_0 : i32, i32
  }
  func.func @transform_4(%arg0: i32, %arg1: i32) -> (i32, i32) {
    %c0_i32 = arith.constant 0 : i32
    %c0_i32_0 = arith.constant 0 : i32
    %c0_i32_1 = arith.constant 0 : i32
    return %c0_i32, %c0_i32_0 : i32, i32
  }
  func.func @transform_5(%arg0: i32, %arg1: i32) -> (i32, i32) {
    %c0_i32 = arith.constant 0 : i32
    %c0_i32_0 = arith.constant 0 : i32
    %c0_i32_1 = arith.constant 0 : i32
    return %c0_i32, %c0_i32_0 : i32, i32
  }
  func.func @transform_6(%arg0: i32, %arg1: i32) -> (i32, i32) {
    %c0_i32 = arith.constant 0 : i32
    %c0_i32_0 = arith.constant 0 : i32
    %c0_i32_1 = arith.constant 0 : i32
    return %c0_i32, %c0_i32_0 : i32, i32
  }
  func.func @transform_7(%arg0: i32, %arg1: i32) -> (i32, i32) {
    %c0_i32 = arith.constant 0 : i32
    %c0_i32_0 = arith.constant 0 : i32
    %c0_i32_1 = arith.constant 0 : i32
    return %c0_i32, %c0_i32_0 : i32, i32
  }
  func.func @transform_8(%arg0: i32, %arg1: i32) -> (i32, i32) {
    %c0_i32 = arith.constant 0 : i32
    %c0_i32_0 = arith.constant 0 : i32
    %c0_i32_1 = arith.constant 0 : i32
    return %c0_i32, %c0_i32_0 : i32, i32
  }
  func.func @transform_9(%arg0: i32, %arg1: i32) -> (i32, i32) {
    %c0_i32 = arith.constant 0 : i32
    %c0_i32_0 = arith.constant 0 : i32
    %c0_i32_1 = arith.constant 0 : i32
    return %c0_i32, %c0_i32_0 : i32, i32
  }
  func.func @transform_10(%arg0: i32, %arg1: i32) -> (i32, i32, i32) {
    %c0_i32 = arith.constant 0 : i32
    %c0_i32_0 = arith.constant 0 : i32
    %c0_i32_1 = arith.constant 0 : i32
    return %arg0, %c0_i32, %c0_i32_0 : i32, i32, i32
  }
}

</mosaic_0001>

<llo_original>
// kernel: tpu_custom_call.1
$region0: #{tpu_custom_call.1}
  #allocation0 [shape = 'u32[]', space=smem, size = 0x4, offset = 0x4, fixed_abs, tag = 'smem constant byte address 0x4 - core index']
  #allocation1 [shape = 'u32[144,128]{1,0:T(1,128)}', space=vmem, size = 0x12000, scoped, tag = 'internal scratch']
  #allocation2 [shape = 'f32[1,1]{1,0:T(1,128)}', space=vmem, size = 0x200, scoped, tag = 'scratch operand']
  #allocation3 [shape = 'f32[1,1]{1,0:T(1,128)}', space=vmem, size = 0x200, scoped, tag = 'scratch operand']
  #allocation4 [shape = 'f32[1,1]{1,0:T(1,128)}', space=vmem, size = 0x200, scoped, tag = 'scratch operand']
  #allocation5 [shape = 'f32[1,1]{1,0:T(1,128)S(1)}', space=vmem, size = 0x200, scoped, tag = 'scoped memory for tpu_custom_call.1']
  %s0 = inlined_call_operand.hbm [shape: bf16[16,16], index: 0, kind: input, shape index: {}]
  %s1 = inlined_call_operand.hbm [shape: bf16[16,16], index: 1, kind: input, shape index: {}]
  %s2 = inlined_call_operand.vmem [shape: bf16[16,16], index: 2, kind: input, shape index: {}]
  %s3 = inlined_call_operand.hbm [shape: bf16[16,64], index: 3, kind: input, shape index: {}]
  %s4 = inlined_call_operand.vmem [shape: bf16[16,64], index: 4, kind: input, shape index: {}]
  %s5 = inlined_call_operand.vmem [shape: f32[1,64], index: 5, kind: input, shape index: {}]
  %s6 = inlined_call_operand.hbm [shape: bf16[64,64], index: 6, kind: input, shape index: {}]
  %s7 = inlined_call_operand.vmem [shape: f32[1,64], index: 7, kind: input, shape index: {}]
  %s8 = inlined_call_operand.vmem [shape: f32[1,64], index: 8, kind: input, shape index: {}]
  %s9 = inlined_call_operand.<no memory space> [shape: f32[1,1], index: 9, kind: input, shape index: {}]
  %s10 = inlined_call_operand.hbm [shape: f32[1,8,128], index: 10, kind: output, shape index: {}]
  %s11 = sld [smem:[#allocation0]]
  $region74: #{tpu_custom_call.1} parent=0
    _
  %s13 = ssub.s32 1, %s11
  %s14 = scalar_select 0, %s13, %s11
  %v15 = vstv %s9
  %16 = vst [vmem:[#allocation5] sm:$0x1] %v15
  $region1: #{tpu_custom_call.1} parent=0
    #allocation6 [shape = 'u8[4096]{0}', space=vmem, size = 0x1000, scoped, tag = 'input window, operand 0, single buffered']
    #allocation7 [shape = 's32[1]{0}', space=sflag, size = 0x4, scoped, tag = 'scoped memory for tpu_custom_call.1']
    #allocation8 [shape = 's32[1]{0}', space=sflag, size = 0x4, scoped, tag = 'scoped memory for tpu_custom_call.1']
    #allocation9 [shape = 'u8[4096]{0}', space=vmem, size = 0x1000, scoped, tag = 'input window, operand 1, single buffered']
    #allocation10 [shape = 's32[1]{0}', space=sflag, size = 0x4, scoped, tag = 'scoped memory for tpu_custom_call.1']
    #allocation11 [shape = 'u8[4096]{0}', space=vmem, size = 0x1000, scoped, tag = 'input window, operand 3, single buffered']
    #allocation12 [shape = 'u8[16384]{0}', space=vmem, size = 0x4000, scoped, tag = 'input window, operand 6, single buffered']
    #allocation13 [shape = 's32[1]{0}', space=sflag, size = 0x4, scoped, tag = 'scoped memory for tpu_custom_call.1']
    #allocation14 [shape = 'u8[4096]{0}', space=vmem, size = 0x1000, scoped, tag = 'output window, operand 0, single buffered']
    %17 = vsyncpa [#allocation7], 0
    %18 = vsyncpa [#allocation10], 0
    %19 = vsyncpa [#allocation13], 0
    %20 = vsyncpa [#allocation8], 0
    // Predicated region
    $region2: #{tpu_custom_call.1} parent=1 // pred_check
      _
    $region3: #{tpu_custom_call.1} parent=1 // pred_check_branch
      %22 = sbr.rel (0) target = $region5
    $region4: #{tpu_custom_call.1} parent=1 // pred_region
      %s23 = sadd.s32 0, 0
      %s24 = smul.u32 2, %s23
      %s26 = ssub.s32 128, 128
      %27 = vsyncadd [#allocation7], %s26
      %s28 = smul.addr %s24, 64
      %s29 = scalar_lea.hbm %s0, %s28
      %s30 = sshll.u32 [#allocation6], 4
      %s31 = int_to_ptr.vmem [resolvable:$true] %s30
      %36 = dma.hbm_to_vmem [thread:$0]  %s29, 128, %s31, [#allocation7], 64, 64, 4
    $region5: #{tpu_custom_call.1} parent=1 // pred_fallthru
      _
    // Predicated region
    $region6: #{tpu_custom_call.1} parent=1 // pred_check
      _
    $region7: #{tpu_custom_call.1} parent=1 // pred_check_branch
      %38 = sbr.rel (0) target = $region9
    $region8: #{tpu_custom_call.1} parent=1 // pred_region
      %s39 = sadd.s32 0, 0
      %s40 = smul.u32 2, %s39
      %s42 = ssub.s32 128, 128
      %43 = vsyncadd [#allocation10], %s42
      %s44 = smul.addr %s40, 64
      %s45 = scalar_lea.hbm %s1, %s44
      %s46 = sshll.u32 [#allocation9], 4
      %s47 = int_to_ptr.vmem [resolvable:$true] %s46
      %52 = dma.hbm_to_vmem [thread:$0]  %s45, 128, %s47, [#allocation10], 64, 64, 4
    $region9: #{tpu_custom_call.1} parent=1 // pred_fallthru
      _
    // Predicated region
    $region10: #{tpu_custom_call.1} parent=1 // pred_check
      _
    $region11: #{tpu_custom_call.1} parent=1 // pred_check_branch
      %54 = sbr.rel (0) target = $region13
    $region12: #{tpu_custom_call.1} parent=1 // pred_region
      %s55 = sadd.s32 0, 0
      %s56 = smul.u32 2, %s55
      %p57 = scmp.lt.s32.totalorder %s56, 1
      %s58 = scalar_select %p57, %s56, 1
      %s59 = smul.addr %s58, 4
      %s60 = scalar_lea.vmem %s2, %s59
      %s61 = sadd.s32 0, 0
      %s62 = smul.u32 2, %s61
    $region13: #{tpu_custom_call.1} parent=1 // pred_fallthru
      _
    // Predicated region
    $region14: #{tpu_custom_call.1} parent=1 // pred_check
      _
    $region15: #{tpu_custom_call.1} parent=1 // pred_check_branch
      %64 = sbr.rel (0) target = $region17
    $region16: #{tpu_custom_call.1} parent=1 // pred_region
      %s66 = ssub.s32 128, 128
      %67 = vsyncadd [#allocation10], %s66
      %s68 = sshll.u32 [#allocation11], 4
      %s69 = int_to_ptr.vmem [resolvable:$true] %s68
      %74 = dma.hbm_to_vmem [thread:$0]  %s3, 128, %s69, [#allocation10], 64, 64, 4
    $region17: #{tpu_custom_call.1} parent=1 // pred_fallthru
      _
    // Predicated region
    $region18: #{tpu_custom_call.1} parent=1 // pred_check
      _
    $region19: #{tpu_custom_call.1} parent=1 // pred_check_branch
      %76 = sbr.rel (0) target = $region21
    $region20: #{tpu_custom_call.1} parent=1 // pred_region
      _
    $region21: #{tpu_custom_call.1} parent=1 // pred_fallthru
      _
    // Predicated region
    $region22: #{tpu_custom_call.1} parent=1 // pred_check
      _
    $region23: #{tpu_custom_call.1} parent=1 // pred_check_branch
      %78 = sbr.rel (0) target = $region25
    $region24: #{tpu_custom_call.1} parent=1 // pred_region
      _
    $region25: #{tpu_custom_call.1} parent=1 // pred_fallthru
      _
    // Predicated region
    $region26: #{tpu_custom_call.1} parent=1 // pred_check
      _
    $region27: #{tpu_custom_call.1} parent=1 // pred_check_branch
      %80 = sbr.rel (0) target = $region29
    $region28: #{tpu_custom_call.1} parent=1 // pred_region
      %s82 = ssub.s32 512, 512
      %83 = vsyncadd [#allocation13], %s82
      %s84 = sshll.u32 [#allocation12], 4
      %s85 = int_to_ptr.vmem [resolvable:$true] %s84
      %90 = dma.hbm_to_vmem [thread:$0]  %s6, 512, %s85, [#allocation13], 64, 64, 4
    $region29: #{tpu_custom_call.1} parent=1 // pred_fallthru
      _
    // Predicated region
    $region30: #{tpu_custom_call.1} parent=1 // pred_check
      _
    $region31: #{tpu_custom_call.1} parent=1 // pred_check_branch
      %92 = sbr.rel (0) target = $region33
    $region32: #{tpu_custom_call.1} parent=1 // pred_region
      _
    $region33: #{tpu_custom_call.1} parent=1 // pred_fallthru
      _
    // Predicated region
    $region34: #{tpu_custom_call.1} parent=1 // pred_check
      _
    $region35: #{tpu_custom_call.1} parent=1 // pred_check_branch
      %94 = sbr.rel (0) target = $region37
    $region36: #{tpu_custom_call.1} parent=1 // pred_region
      _
    $region37: #{tpu_custom_call.1} parent=1 // pred_fallthru
      _
    // Predicated region
    $region38: #{tpu_custom_call.1} parent=1 // pred_check
      _
    $region39: #{tpu_custom_call.1} parent=1 // pred_check_branch
      %96 = sbr.rel (0) target = $region41
    $region40: #{tpu_custom_call.1} parent=1 // pred_region
      _
    $region41: #{tpu_custom_call.1} parent=1 // pred_fallthru
      _
    // Predicated region
    $region42: #{tpu_custom_call.1} parent=1 // pred_check
      _
    $region43: #{tpu_custom_call.1} parent=1 // pred_check_branch
      %98 = sbr.rel (0) target = $region45
    $region44: #{tpu_custom_call.1} parent=1 // pred_region
      %99 = dma.done [#allocation7], 128
    $region45: #{tpu_custom_call.1} parent=1 // pred_fallthru
      _
    // Predicated region
    $region46: #{tpu_custom_call.1} parent=1 // pred_check
      _
    $region47: #{tpu_custom_call.1} parent=1 // pred_check_branch
      %101 = sbr.rel (0) target = $region49
    $region48: #{tpu_custom_call.1} parent=1 // pred_region
      %102 = dma.done [#allocation10], 128
    $region49: #{tpu_custom_call.1} parent=1 // pred_fallthru
      _
    // Predicated region
    $region50: #{tpu_custom_call.1} parent=1 // pred_check
      _
    $region51: #{tpu_custom_call.1} parent=1 // pred_check_branch
      %104 = sbr.rel (0) target = $region53
    $region52: #{tpu_custom_call.1} parent=1 // pred_region
      %105 = dma.done [#allocation10], 128
    $region53: #{tpu_custom_call.1} parent=1 // pred_fallthru
      _
    // Predicated region
    $region54: #{tpu_custom_call.1} parent=1 // pred_check
      _
    $region55: #{tpu_custom_call.1} parent=1 // pred_check_branch
      %107 = sbr.rel (0) target = $region57
    $region56: #{tpu_custom_call.1} parent=1 // pred_region
      %108 = dma.done [#allocation13], 512
    $region57: #{tpu_custom_call.1} parent=1 // pred_fallthru
      _
    %s109 = sadd.s32 0, 0
    %s110 = smul.u32 2, %s109
    %p111 = scmp.lt.s32.totalorder %s110, 1
    %s112 = scalar_select %p111, %s110, 1
    %s113 = smul.addr %s112, 4
    %s114 = scalar_lea.vmem %s2, %s113
    %s115 = sadd.s32 0, 0
    %s116 = smul.u32 2, %s115
    %s117 = sadd.s32 0, 0
    %s118 = smul.u32 2, %s117
    %s119 = sadd.s32 0, 0
    %s120 = smul.u32 2, %s119
    %p121 = scmp.lt.s32.totalorder %s120, 1
    %s122 = scalar_select %p121, %s120, 1
    %s123 = smul.addr %s122, 4
    %s124 = scalar_lea.vmem %s2, %s123
    %s125 = sadd.s32 0, 0
    %s126 = smul.u32 2, %s125
    %p128 = scmp.eq.s32.totalorder 0, 0
    // Predicated region
    $region58: #{tpu_custom_call.1} parent=1 // pred_check
      %p129 = pneg %p128
    $region59: #{tpu_custom_call.1} parent=1 // pred_check_branch
      %131 = sbr.rel (%p129) target = $region61
    $region60: #{tpu_custom_call.1} parent=1 // pred_region
      %vm132 = vcmask 0
      %133 = vst.msk [vmem:[#allocation2] sm:$0x1] %vm132, 0.0
      %134 = vst.msk [vmem:[#allocation3] sm:$0x1] %vm132, -inf
      %135 = vst.msk [vmem:[#allocation4] sm:$0x1] %vm132, 0.0
    $region61: #{tpu_custom_call.1} parent=1 // pred_fallthru
      _
    %s136 = sadd.s32 0, 0
    %s137 = smul.u32 %s136, 16
    %v138 = vlaneseq
    %v139 = vshrl.u32 %v138, 7
    %v140 = vadd.s32 %v139, 8
    %v141 = vstv %s137
    %v142 = vadd.s32 %v141, %v139
    %v143 = vadd.s32 %v141, %v140
    %vm144 = vcmp.lt.s32.totalorder %v142, 8
    %vm145 = vcmp.lt.s32.totalorder %v143, 8
    %v146 = vsel %vm144, 1, 0
    %v147 = vsel %vm145, 1, 0
    %v148 = vcvt.s32.f32 %v146
    %v149 = vcvt.s32.f32 %v147
    %v150 = vld [vmem:[#allocation6] sm:$0xf]
    %v151 = vld [vmem:[#allocation6 + $0x4] sm:$0xf]
    %v152 = vld [vmem:[#allocation11] sm:$0xf]
    %v153 = vld [vmem:[#allocation11 + $0x4] sm:$0xf]
    %v156 = vunpack.c.l.b16 %v150
    %v157 = vunpack.c.l.b16 %v151
    %v158 = vpack.c.b16 %v157, %v156
    %v161 = vunpack.c.l.b16 %v152
    %v162 = vunpack.c.l.b16 %v153
    %v163 = vpack.c.b16 %v162, %v161
    %vm165 = vcmask 130048
    %v167 = vsel %vm165, %v158, 0
    %169 = vmatprep.subr.bf16.mxu0 0
    %170 = vmatpush1.bf16.msra.mxu0 %v163
    %171 = vmatprep.subr.bf16.mxu0 0
    %172 = vmatpush1.bf16.msra.mxu0 0
    %173 = vmatprep.subr.bf16.mxu0 0
    %174 = vmatpush1.bf16.msra.mxu0 0
    %175 = vmatprep.subr.bf16.mxu0 0
    %176 = vmatpush1.bf16.msra.mxu0 0
    %177 = vmatprep.subr.bf16.mxu0 0
    %178 = vmatpush1.bf16.msra.mxu0 0
    %179 = vmatprep.subr.bf16.mxu0 0
    %180 = vmatpush1.bf16.msra.mxu0 0
    %181 = vmatprep.subr.bf16.mxu0 0
    %182 = vmatpush1.bf16.msra.mxu0 0
    %183 = vmatprep.subr.bf16.mxu0 0
    %184 = vmatpush1.bf16.msra.mxu0 0
    %185 = vmatprep.subr.bf16.mxu0 0
    %186 = vmatpush1.bf16.msra.mxu0 0
    %187 = vmatprep.subr.bf16.mxu0 0
    %188 = vmatpush1.bf16.msra.mxu0 0
    %189 = vmatprep.subr.bf16.mxu0 0
    %190 = vmatpush1.bf16.msra.mxu0 0
    %191 = vmatprep.subr.bf16.mxu0 0
    %192 = vmatpush1.bf16.msra.mxu0 0
    %193 = vmatprep.subr.bf16.mxu0 0
    %194 = vmatpush1.bf16.msra.mxu0 0
    %195 = vmatprep.subr.bf16.mxu0 0
    %196 = vmatpush1.bf16.msra.mxu0 0
    %197 = vmatprep.subr.bf16.mxu0 0
    %198 = vmatpush1.bf16.msra.mxu0 0
    %199 = vmatprep.subr.bf16.mxu0 0
    %200 = vmatpush1.bf16.msra.mxu0 0
    %201 = vmatprep.mubr.bf16.mxu0 0
    %202 = vmatmul.mubr.bf16.gmra.mrb[0].mxu0 %v167
    %v203 = vpop.f32.mrb[0].mxu0
    %v204 = vadd.f32 0.0, %v203
    %v205 = vpop.f32.mrb[0].mxu0
    %v206 = vpop.f32.mrb[0].mxu0
    %v207 = vadd.f32 0.0, %v206
    %v208 = vpop.f32.mrb[0].mxu0
    %209 = vdwg.mxu0
    %v210 = vld [vmem:[#allocation9] sm:$0xf]
    %v211 = vld [vmem:[#allocation9 + $0x4] sm:$0xf]
    %v212 = vld [vmem:[%s4] sm:$0xf]
    %v213 = vld [vmem:[%s4 + $0x4] sm:$0xf]
    %v216 = vunpack.c.l.b16 %v210
    %v217 = vunpack.c.l.b16 %v211
    %v218 = vpack.c.b16 %v217, %v216
    %v221 = vunpack.c.l.b16 %v212
    %v222 = vunpack.c.l.b16 %v213
    %v223 = vpack.c.b16 %v222, %v221
    %v226 = vsel %vm165, %v218, 0
    %228 = vmatprep.subr.bf16.mxu0 0
    %229 = vmatpush1.bf16.msra.mxu0 %v223
    %230 = vmatprep.subr.bf16.mxu0 0
    %231 = vmatpush1.bf16.msra.mxu0 0
    %232 = vmatprep.subr.bf16.mxu0 0
    %233 = vmatpush1.bf16.msra.mxu0 0
    %234 = vmatprep.subr.bf16.mxu0 0
    %235 = vmatpush1.bf16.msra.mxu0 0
    %236 = vmatprep.subr.bf16.mxu0 0
    %237 = vmatpush1.bf16.msra.mxu0 0
    %238 = vmatprep.subr.bf16.mxu0 0
    %239 = vmatpush1.bf16.msra.mxu0 0
    %240 = vmatprep.subr.bf16.mxu0 0
    %241 = vmatpush1.bf16.msra.mxu0 0
    %242 = vmatprep.subr.bf16.mxu0 0
    %243 = vmatpush1.bf16.msra.mxu0 0
    %244 = vmatprep.subr.bf16.mxu0 0
    %245 = vmatpush1.bf16.msra.mxu0 0
    %246 = vmatprep.subr.bf16.mxu0 0
    %247 = vmatpush1.bf16.msra.mxu0 0
    %248 = vmatprep.subr.bf16.mxu0 0
    %249 = vmatpush1.bf16.msra.mxu0 0
    %250 = vmatprep.subr.bf16.mxu0 0
    %251 = vmatpush1.bf16.msra.mxu0 0
    %252 = vmatprep.subr.bf16.mxu0 0
    %253 = vmatpush1.bf16.msra.mxu0 0
    %254 = vmatprep.subr.bf16.mxu0 0
    %255 = vmatpush1.bf16.msra.mxu0 0
    %256 = vmatprep.subr.bf16.mxu0 0
    %257 = vmatpush1.bf16.msra.mxu0 0
    %258 = vmatprep.subr.bf16.mxu0 0
    %259 = vmatpush1.bf16.msra.mxu0 0
    %260 = vmatprep.mubr.bf16.mxu0 0
    %261 = vmatmul.mubr.bf16.gmra.mrb[0].mxu0 %v226
    %v262 = vpop.f32.mrb[0].mxu0
    %v263 = vadd.f32 0.0, %v262
    %v264 = vpop.f32.mrb[0].mxu0
    %v265 = vpop.f32.mrb[0].mxu0
    %v266 = vadd.f32 0.0, %v265
    %v267 = vpop.f32.mrb[0].mxu0
    %268 = vdwg.mxu0
    %v269 = vadd.f32 %v204, %v263
    %v270 = vadd.f32 %v207, %v266
    %v271 = vld [vmem:[%s5] sm:$0x1]
    %v273 = vlaneseq
    %v274 = vshrl.u32 %v273, 7
    %v275 = vsub.s32 0, %v274
    %v276 = vrot.slane %v271, %v275
    %v278 = vadd.f32 %v269, %v276
    %v279 = vadd.f32 %v270, %v276
    %v280 = vmax.f32 %v278, 0.0
    %v281 = vmax.f32 %v279, 0.0
    %v282 = vpack.c.bf16 %v281, %v280
    %v283 = vld [vmem:[#allocation12] sm:$0xf]
    %v284 = vld [vmem:[#allocation12 + $0x4] sm:$0xf]
    %v285 = vld [vmem:[#allocation12 + $0x8] sm:$0xf]
    %v286 = vld [vmem:[#allocation12 + $0xc] sm:$0xf]
    %v287 = vld [vmem:[#allocation12 + $0x10] sm:$0xf]
    %v288 = vld [vmem:[#allocation12 + $0x14] sm:$0xf]
    %v289 = vld [vmem:[#allocation12 + $0x18] sm:$0xf]
    %v290 = vld [vmem:[#allocation12 + $0x1c] sm:$0xf]
    %v291 = vld [vmem:[%s7] sm:$0x1]
    %v293 = vlaneseq
    %v294 = vshrl.u32 %v293, 7
    %v295 = vsub.s32 0, %v294
    %v296 = vrot.slane %v291, %v295
    %v306 = vunpack.c.l.b16 %v283
    %v307 = vunpack.c.l.b16 %v284
    %v308 = vunpack.c.l.b16 %v285
    %v309 = vunpack.c.l.b16 %v286
    %v310 = vunpack.c.l.b16 %v287
    %v311 = vunpack.c.l.b16 %v288
    %v312 = vunpack.c.l.b16 %v289
    %v313 = vunpack.c.l.b16 %v290
    %v314 = vpack.c.b16 %v307, %v306
    %v315 = vpack.c.b16 %v309, %v308
    %v316 = vpack.c.b16 %v311, %v310
    %v317 = vpack.c.b16 %v313, %v312
    %vm322 = vcmask 523264
    %v324 = vsel %vm322, %v282, 0
    %326 = vmatprep.subr.bf16.mxu0 0
    %327 = vmatpush1.bf16.msra.mxu0 %v314
    %328 = vmatprep.subr.bf16.mxu0 0
    %329 = vmatpush1.bf16.msra.mxu0 %v315
    %330 = vmatprep.subr.bf16.mxu0 0
    %331 = vmatpush1.bf16.msra.mxu0 %v316
    %332 = vmatprep.subr.bf16.mxu0 0
    %333 = vmatpush1.bf16.msra.mxu0 %v317
    %334 = vmatprep.subr.bf16.mxu0 0
    %335 = vmatpush1.bf16.msra.mxu0 0
    %336 = vmatprep.subr.bf16.mxu0 0
    %337 = vmatpush1.bf16.msra.mxu0 0
    %338 = vmatprep.subr.bf16.mxu0 0
    %339 = vmatpush1.bf16.msra.mxu0 0
    %340 = vmatprep.subr.bf16.mxu0 0
    %341 = vmatpush1.bf16.msra.mxu0 0
    %342 = vmatprep.subr.bf16.mxu0 0
    %343 = vmatpush1.bf16.msra.mxu0 0
    %344 = vmatprep.subr.bf16.mxu0 0
    %345 = vmatpush1.bf16.msra.mxu0 0
    %346 = vmatprep.subr.bf16.mxu0 0
    %347 = vmatpush1.bf16.msra.mxu0 0
    %348 = vmatprep.subr.bf16.mxu0 0
    %349 = vmatpush1.bf16.msra.mxu0 0
    %350 = vmatprep.subr.bf16.mxu0 0
    %351 = vmatpush1.bf16.msra.mxu0 0
    %352 = vmatprep.subr.bf16.mxu0 0
    %353 = vmatpush1.bf16.msra.mxu0 0
    %354 = vmatprep.subr.bf16.mxu0 0
    %355 = vmatpush1.bf16.msra.mxu0 0
    %356 = vmatprep.subr.bf16.mxu0 0
    %357 = vmatpush1.bf16.msra.mxu0 0
    %358 = vmatprep.mubr.bf16.mxu0 0
    %359 = vmatmul.mubr.bf16.gmra.mrb[0].mxu0 %v324
    %v360 = vpop.f32.mrb[0].mxu0
    %v361 = vadd.f32 %v296, %v360
    %v362 = vpop.f32.mrb[0].mxu0
    %v363 = vpop.f32.mrb[0].mxu0
    %v364 = vadd.f32 %v296, %v363
    %v365 = vpop.f32.mrb[0].mxu0
    %366 = vdwg.mxu0
    %v367 = vmax.f32 %v361, 0.0
    %v368 = vmax.f32 %v364, 0.0
    %v369 = vld [vmem:[%s124] sm:$0xf]
    %v370 = vld [vmem:[%s124 + $0x4] sm:$0xf]
    %v373 = vunpack.c.l.b16 %v369
    %v374 = vunpack.c.l.b16 %v370
    %v375 = vpack.c.b16 %v374, %v373
    %v377 = vsel %vm165, %v375, 0
    %379 = vmatprep.subr.bf16.mxu0 0
    %380 = vmatpush1.bf16.msra.mxu0 %v223
    %381 = vmatprep.subr.bf16.mxu0 0
    %382 = vmatpush1.bf16.msra.mxu0 0
    %383 = vmatprep.subr.bf16.mxu0 0
    %384 = vmatpush1.bf16.msra.mxu0 0
    %385 = vmatprep.subr.bf16.mxu0 0
    %386 = vmatpush1.bf16.msra.mxu0 0
    %387 = vmatprep.subr.bf16.mxu0 0
    %388 = vmatpush1.bf16.msra.mxu0 0
    %389 = vmatprep.subr.bf16.mxu0 0
    %390 = vmatpush1.bf16.msra.mxu0 0
    %391 = vmatprep.subr.bf16.mxu0 0
    %392 = vmatpush1.bf16.msra.mxu0 0
    %393 = vmatprep.subr.bf16.mxu0 0
    %394 = vmatpush1.bf16.msra.mxu0 0
    %395 = vmatprep.subr.bf16.mxu0 0
    %396 = vmatpush1.bf16.msra.mxu0 0
    %397 = vmatprep.subr.bf16.mxu0 0
    %398 = vmatpush1.bf16.msra.mxu0 0
    %399 = vmatprep.subr.bf16.mxu0 0
    %400 = vmatpush1.bf16.msra.mxu0 0
    %401 = vmatprep.subr.bf16.mxu0 0
    %402 = vmatpush1.bf16.msra.mxu0 0
    %403 = vmatprep.subr.bf16.mxu0 0
    %404 = vmatpush1.bf16.msra.mxu0 0
    %405 = vmatprep.subr.bf16.mxu0 0
    %406 = vmatpush1.bf16.msra.mxu0 0
    %407 = vmatprep.subr.bf16.mxu0 0
    %408 = vmatpush1.bf16.msra.mxu0 0
    %409 = vmatprep.subr.bf16.mxu0 0
    %410 = vmatpush1.bf16.msra.mxu0 0
    %411 = vmatprep.mubr.bf16.mxu0 0
    %412 = vmatmul.mubr.bf16.gmra.mrb[0].mxu0 %v377
    %v413 = vpop.f32.mrb[0].mxu0
    %v414 = vadd.f32 0.0, %v413
    %v415 = vpop.f32.mrb[0].mxu0
    %v416 = vpop.f32.mrb[0].mxu0
    %v417 = vadd.f32 0.0, %v416
    %v418 = vpop.f32.mrb[0].mxu0
    %419 = vdwg.mxu0
    %v420 = vadd.f32 %v204, %v414
    %v421 = vadd.f32 %v207, %v417
    %v422 = vadd.f32 %v420, %v276
    %v423 = vadd.f32 %v421, %v276
    %v424 = vmax.f32 %v422, 0.0
    %v425 = vmax.f32 %v423, 0.0
    %v426 = vpack.c.bf16 %v425, %v424
    %v428 = vsel %vm322, %v426, 0
    %430 = vmatprep.subr.bf16.mxu0 0
    %431 = vmatpush1.bf16.msra.mxu0 %v314
    %432 = vmatprep.subr.bf16.mxu0 0
    %433 = vmatpush1.bf16.msra.mxu0 %v315
    %434 = vmatprep.subr.bf16.mxu0 0
    %435 = vmatpush1.bf16.msra.mxu0 %v316
    %436 = vmatprep.subr.bf16.mxu0 0
    %437 = vmatpush1.bf16.msra.mxu0 %v317
    %438 = vmatprep.subr.bf16.mxu0 0
    %439 = vmatpush1.bf16.msra.mxu0 0
    %440 = vmatprep.subr.bf16.mxu0 0
    %441 = vmatpush1.bf16.msra.mxu0 0
    %442 = vmatprep.subr.bf16.mxu0 0
    %443 = vmatpush1.bf16.msra.mxu0 0
    %444 = vmatprep.subr.bf16.mxu0 0
    %445 = vmatpush1.bf16.msra.mxu0 0
    %446 = vmatprep.subr.bf16.mxu0 0
    %447 = vmatpush1.bf16.msra.mxu0 0
    %448 = vmatprep.subr.bf16.mxu0 0
    %449 = vmatpush1.bf16.msra.mxu0 0
    %450 = vmatprep.subr.bf16.mxu0 0
    %451 = vmatpush1.bf16.msra.mxu0 0
    %452 = vmatprep.subr.bf16.mxu0 0
    %453 = vmatpush1.bf16.msra.mxu0 0
    %454 = vmatprep.subr.bf16.mxu0 0
    %455 = vmatpush1.bf16.msra.mxu0 0
    %456 = vmatprep.subr.bf16.mxu0 0
    %457 = vmatpush1.bf16.msra.mxu0 0
    %458 = vmatprep.subr.bf16.mxu0 0
    %459 = vmatpush1.bf16.msra.mxu0 0
    %460 = vmatprep.subr.bf16.mxu0 0
    %461 = vmatpush1.bf16.msra.mxu0 0
    %462 = vmatprep.mubr.bf16.mxu0 0
    %463 = vmatmul.mubr.bf16.gmra.mrb[0].mxu0 %v428
    %v464 = vpop.f32.mrb[0].mxu0
    %v465 = vadd.f32 %v296, %v464
    %v466 = vpop.f32.mrb[0].mxu0
    %v467 = vpop.f32.mrb[0].mxu0
    %v468 = vadd.f32 %v296, %v467
    %v469 = vpop.f32.mrb[0].mxu0
    %470 = vdwg.mxu0
    %v471 = vmax.f32 %v465, 0.0
    %v472 = vmax.f32 %v468, 0.0
    %v473 = vld [vmem:[%s8] sm:$0x1]
    %v474 = vld [vmem:[#allocation5] sm:$0x1]
    %s475 = vtos %v474
    %vm476 = vcmask 7168
    %v477 = vsel %vm476, %v148, 0.0
    %v478 = vsel %vm476, %v149, 0.0
    %v479 = vadd.f32 %v477, %v478
    %480 = vadd.xlane.f32.xlu0 %v479
    %v481 = vpop.xlane.xlu0 %480
    %v482 = vrot.slane %v481, 4
    %v483 = vadd.f32 %v481, %v482
    %v484 = vrot.slane %v483, 2
    %v485 = vadd.f32 %v483, %v484
    %v486 = vrot.slane %v485, 1
    %v487 = vadd.f32 %v485, %v486
    %s488 = vtos %v487
    %v489 = vld [vmem:[#allocation2] sm:$0x1]
    %v491 = vlaneseq
    %v492 = vshrl.u32 %v491, 7
    %v493 = vsub.s32 0, %v492
    %v494 = vrot.slane %v473, %v493
    %v496 = vmul.f32 %v367, %v494
    %v497 = vmul.f32 %v368, %v494
    %v498 = vmul.f32 %v496, %v148
    %v499 = vmul.f32 %v497, %v149
    %v500 = vsel %vm322, %v498, 0.0
    %v501 = vsel %vm322, %v499, 0.0
    %v502 = vadd.f32 %v500, %v501
    %503 = vadd.xlane.f32.xlu0 %v502
    %v504 = vpop.xlane.xlu0 %503
    %v505 = vrot.slane %v504, 4
    %v506 = vadd.f32 %v504, %v505
    %v507 = vrot.slane %v506, 2
    %v508 = vadd.f32 %v506, %v507
    %v509 = vrot.slane %v508, 1
    %v510 = vadd.f32 %v508, %v509
    %s511 = vtos %v510
    %s512 = smul.f32 %s488, %s475
    %s513 = sadd.f32 %s511, %s512
    %v514 = vstv %s513
    %v515 = vadd.f32 %v489, %v514
    %vm516 = vcmask 0
    %517 = vst.msk [vmem:[#allocation2] sm:$0x1] %vm516, %v515
    %v518 = vmul.f32 %v471, %v494
    %v519 = vmul.f32 %v472, %v494
    %v520 = vsel %vm322, %v518, 0.0
    %521 = vadd.xlane.f32.xlu0 %v520
    %v522 = vpop.xlane.xlu0 %521
    %v523 = vsel %vm322, %v519, 0.0
    %524 = vadd.xlane.f32.xlu0 %v523
    %v525 = vpop.xlane.xlu0 %524
    %v526 = vstv %s475
    %v527 = vadd.f32 %v522, %v526
    %v528 = vadd.f32 %v525, %v526
    %v529 = vsel %vm144, %v527, -inf
    %v530 = vsel %vm145, %v528, -inf
    %v531 = vld [vmem:[#allocation3] sm:$0x1]
    %v532 = vmax.f32 %v529, %v530
    %v533 = vrot.slane %v532, 4
    %v534 = vmax.f32 %v532, %v533
    %v535 = vrot.slane %v534, 2
    %v536 = vmax.f32 %v534, %v535
    %v537 = vrot.slane %v536, 1
    %v538 = vmax.f32 %v536, %v537
    %s539 = vtos %v538
    %v540 = vstv %s539
    %v541 = vmax.f32 %v531, %v540
    %v542 = vld [vmem:[#allocation4] sm:$0x1]
    %v543 = vsub.f32 %v531, %v541
    %v544 = vmul.f32 %v543, 1.442695
    %v545 = vpow.pop %v544
    %v546 = vmul.f32 %v542, %v545
    %v548 = vlaneseq
    %v549 = vshrl.u32 %v548, 7
    %v550 = vsub.s32 0, %v549
    %v551 = vrot.slane %v541, %v550
    %v553 = vsub.f32 %v529, %v551
    %v554 = vsub.f32 %v530, %v551
    %v555 = vmul.f32 %v553, 1.442695
    %v556 = vpow.pop %v555
    %v557 = vmul.f32 %v554, 1.442695
    %v558 = vpow.pop %v557
    %v559 = vsel %vm476, %v556, 0.0
    %v560 = vsel %vm476, %v558, 0.0
    %v561 = vadd.f32 %v559, %v560
    %562 = vadd.xlane.f32.xlu0 %v561
    %v563 = vpop.xlane.xlu0 %562
    %v564 = vrot.slane %v563, 4
    %v565 = vadd.f32 %v563, %v564
    %v566 = vrot.slane %v565, 2
    %v567 = vadd.f32 %v565, %v566
    %v568 = vrot.slane %v567, 1
    %v569 = vadd.f32 %v567, %v568
    %s570 = vtos %v569
    %v571 = vstv %s570
    %v572 = vadd.f32 %v546, %v571
    %573 = vst.msk [vmem:[#allocation4] sm:$0x1] %vm516, %v572
    %574 = vst.msk [vmem:[#allocation3] sm:$0x1] %vm516, %v541
    // Predicated region
    $region62: #{tpu_custom_call.1} parent=1 // pred_check
      %p575 = pneg %p128
    $region63: #{tpu_custom_call.1} parent=1 // pred_check_branch
      %577 = sbr.rel (%p575) target = $region65
    $region64: #{tpu_custom_call.1} parent=1 // pred_region
      %v578 = vlaneseq
      %v579 = vand.u32 %v578, 127
      %vm580 = vcmp.eq.s32.totalorder %v579, 0
      %v581 = vld [vmem:[#allocation2] sm:$0x1]
      %s582 = vtos %v581
      %vm583 = vcmp.eq.s32.totalorder %v579, 1
      %v584 = vld [vmem:[#allocation3] sm:$0x1]
      %s585 = vtos %v584
      %vm586 = vcmp.eq.s32.totalorder %v579, 2
      %v587 = vld [vmem:[#allocation4] sm:$0x1]
      %s588 = vtos %v587
      %v589 = vstv %s588
      %v590 = vsel %vm586, %v589, 0.0
      %v591 = vstv %s585
      %v592 = vsel %vm583, %v591, %v590
      %v593 = vstv %s582
      %v594 = vsel %vm580, %v593, %v592
      %595 = vst [vmem:[#allocation14] sm:$0xff] %v594
    $region65: #{tpu_custom_call.1} parent=1 // pred_fallthru
      _
    // Predicated region
    $region66: #{tpu_custom_call.1} parent=1 // pred_check
      _
    $region67: #{tpu_custom_call.1} parent=1 // pred_check_branch
      %597 = sbr.rel (0) target = $region69
    $region68: #{tpu_custom_call.1} parent=1 // pred_region
      %s599 = ssub.s32 128, 128
      %600 = vsyncadd [#allocation8], %s599
      %s602 = sshll.u32 [#allocation14], 4
      %s603 = int_to_ptr.vmem [resolvable:$true] %s602
      %605 = dma.vmem_to_hbm [thread:$0]  %s603, 128, %s10, [#allocation8]
    $region69: #{tpu_custom_call.1} parent=1 // pred_fallthru
      _
    // Predicated region
    $region70: #{tpu_custom_call.1} parent=1 // pred_check
      _
    $region71: #{tpu_custom_call.1} parent=1 // pred_check_branch
      %607 = sbr.rel (0) target = $region73
    $region72: #{tpu_custom_call.1} parent=1 // pred_region
      %608 = dma.done [#allocation8], 128
    $region73: #{tpu_custom_call.1} parent=1 // pred_fallthru
      _
    %609 = vsyncpa [#allocation7], 1
    %610 = vsyncpa [#allocation10], 1
    %611 = vsyncpa [#allocation13], 1
    %612 = vsyncpa [#allocation8], 1

</llo_original>
